<compile_context>
chip_gen: v7x
topology: tpu7x:2x2x1
jax: 0.10.0
libtpu: 0.0.40
codegen_flags: <defaults>
</compile_context>

<pallas_src>
import functools

import jax
import jax.numpy as jnp
from jax.experimental import pallas as pl
from jax.experimental.pallas import tpu as pltpu


# ---------------------------------------------------------------------------
# Kernels
# ---------------------------------------------------------------------------

def _denoiser_small_c_kernel(w_ref, bias_ref, cskip_ref, x_ref, o_ref, *, C):
    """C <= 8: per-channel (T_S, L) slabs, SMEM scalar weights, unrolled FMA."""
    b = pl.program_id(0)
    c_skip = cskip_ref[b]

    # Upcast each channel slab once; compute in f32, cast only at the store.
    xs = [x_ref[0, c].astype(jnp.float32) for c in range(C)]

    for o in range(C):
        acc = xs[0] * w_ref[b, o * C + 0]
        for c in range(1, C):
            acc = acc + xs[c] * w_ref[b, o * C + c]
        acc = acc + bias_ref[b, o] + xs[o] * c_skip
        o_ref[0, o] = acc.astype(o_ref.dtype)


def _denoiser_large_c_kernel(cskip_ref, x_ref, w_ref, bias_ref, o_ref):
    """C > 8: MXU matmul on a lane-dense (C, T_HW) tile; weights pre-scaled by
    c_in*c_out and pre-cast in the wrapper, so the rhs is the native-dtype x."""
    b = pl.program_id(0)
    c_skip = cskip_ref[b]

    x = x_ref[0]                                        # (C, T_HW), native dtype
    w = w_ref[0]                                        # (C, C)
    rhs = x if x.dtype == w.dtype else x.astype(w.dtype)
    net = jnp.dot(w, rhs, preferred_element_type=jnp.float32)
    net = net + bias_ref[0]                             # (C, 1) f32
    o_ref[0] = (net + x.astype(jnp.float32) * c_skip).astype(o_ref.dtype)


# ---------------------------------------------------------------------------
# Tile sizing
# ---------------------------------------------------------------------------

_TARGET_STEP_BYTES = 4 << 20    # ~4 MiB in+out HBM traffic per grid step
_MIN_GRID_STEPS = 4             # keep megacore / pipeline fed


def _pick_small_c_tiles(hwp, c, itemsize, batch):
    """Lane width L and sublane rows per step (T_S) for the C<=8 path."""
    # Prefer wide lanes but keep >= 8 sublane rows so channel slabs are full
    # (8,128) vreg tiles; for tiny spatial extents just maximise lane width.
    L = 128
    for cand in (1024, 512, 256):
        if hwp % cand == 0 and hwp // cand >= 8:
            L = cand
            break
    if hwp // L < 8:
        for cand in (1024, 512, 256):
            if hwp % cand == 0:
                L = cand
                break
    S = hwp // L

    ts = _TARGET_STEP_BYTES // (2 * c * L * itemsize)
    ts = max(8, (ts // 8) * 8)
    if ts >= S:
        ts = S                                  # full extent is always legal
    while ts > 8 and batch * pl.cdiv(S, ts) < _MIN_GRID_STEPS:
        ts = max(8, (ts // 2 // 8) * 8)
    return L, S, ts


def _pick_large_c_lane_tile(hwp, c, itemsize, batch):
    """Lane tile for the C>8 MXU path (256-aligned when possible)."""
    align = 256 if hwp % 256 == 0 else 128
    t = _TARGET_STEP_BYTES // (2 * c * itemsize)
    t = max(align, (t // align) * align)
    t = min(t, hwp)
    while t > align and batch * pl.cdiv(hwp, t) < _MIN_GRID_STEPS:
        t = max(align, (t // 2 // align) * align)
    return t


# ---------------------------------------------------------------------------
# Wrapper
# ---------------------------------------------------------------------------

def denoiser_forward(noised_input, sigma, cond_bias, w, b, emb_w):
    """noised_input: (B, C, H, W) float, sigma: (B,) > 0, cond_bias: (B, C),
    w: (C, C), b: (C,), emb_w: (C,)."""
    B, C, H, W = noised_input.shape
    HW = H * W
    in_dtype = noised_input.dtype
    itemsize = jnp.dtype(in_dtype).itemsize

    x = noised_input.reshape(B, C, HW)          # native dtype, no extra HBM pass
    pad = (-HW) % 128
    if pad:                                     # rare: keep blocks (8,128)-legal
        x = jnp.pad(x, ((0, 0), (0, 0), (0, pad)))
    HWp = HW + pad

    # Per-batch scalar math (negligible), once in the wrapper.
    sigma_f = sigma.astype(jnp.float32)
    sig2p1 = sigma_f * sigma_f + 1.0
    c_skip = 1.0 / sig2p1
    c_in = 1.0 / jnp.sqrt(sig2p1)
    c_out = -sigma_f * c_in
    c_noise = 0.25 * jnp.log(sigma_f)           # assumes sigma > 0 (as reference)

    # Fold c_in / c_out into per-batch effective weight and bias:
    #   out = (w * c_in*c_out) @ x + (b + emb_w*c_noise + cond) * c_out + x*c_skip
    w_eff = w.astype(jnp.float32)[None] * (c_in * c_out)[:, None, None]   # (B,C,C)
    bias_eff = (b.astype(jnp.float32)[None, :]
                + emb_w.astype(jnp.float32)[None, :] * c_noise[:, None]
                + cond_bias.astype(jnp.float32)) * c_out[:, None]          # (B,C)

    cparams = pltpu.CompilerParams(
        dimension_semantics=("parallel", "parallel"),
        vmem_limit_bytes=48 << 20)

    if C <= 8:
        L, S, ts = _pick_small_c_tiles(HWp, C, itemsize, B)
        x4 = x.reshape(B, C, S, L)
        grid = (B, pl.cdiv(S, ts))
        out = pl.pallas_call(
            functools.partial(_denoiser_small_c_kernel, C=C),
            out_shape=jax.ShapeDtypeStruct((B, C, S, L), in_dtype),
            grid_spec=pltpu.PrefetchScalarGridSpec(
                num_scalar_prefetch=0,
                grid=grid,
                in_specs=[
                    pl.BlockSpec(memory_space=pltpu.MemorySpace.SMEM),  # w (B, C*C)
                    pl.BlockSpec(memory_space=pltpu.MemorySpace.SMEM),  # bias (B, C)
                    pl.BlockSpec(memory_space=pltpu.MemorySpace.SMEM),  # c_skip (B,)
                    pl.BlockSpec((1, C, ts, L), lambda i, j: (i, 0, j, 0)),
                ],
                out_specs=pl.BlockSpec((1, C, ts, L), lambda i, j: (i, 0, j, 0)),
            ),
            compiler_params=cparams,
        )(w_eff.reshape(B, C * C), bias_eff, c_skip, x4)
        out = out.reshape(B, C, HWp)
    else:
        t_hw = _pick_large_c_lane_tile(HWp, C, itemsize, B)
        grid = (B, pl.cdiv(HWp, t_hw))
        # Pre-cast the per-batch weight once (not per grid step).
        if jnp.dtype(in_dtype) == jnp.dtype(jnp.float32):
            w_mxu = w_eff
        else:
            w_mxu = w_eff.astype(jnp.bfloat16)
        out = pl.pallas_call(
            _denoiser_large_c_kernel,
            out_shape=jax.ShapeDtypeStruct((B, C, HWp), in_dtype),
            grid_spec=pltpu.PrefetchScalarGridSpec(
                num_scalar_prefetch=0,
                grid=grid,
                in_specs=[
                    pl.BlockSpec(memory_space=pltpu.MemorySpace.SMEM),   # c_skip (B,)
                    pl.BlockSpec((1, C, t_hw), lambda i, j: (i, 0, j)),  # x tile
                    pl.BlockSpec((1, C, C), lambda i, j: (i, 0, 0)),     # weight/batch
                    pl.BlockSpec((1, C, 1), lambda i, j: (i, 0, 0)),     # bias/batch
                ],
                out_specs=pl.BlockSpec((1, C, t_hw), lambda i, j: (i, 0, j)),
            ),
            compiler_params=cparams,
        )(c_skip, x, w_mxu, bias_eff.reshape(B, C, 1))

    if pad:
        out = out[:, :, :HW]
    return out.reshape(B, C, H, W)


def denoiser_reference(noised_input, sigma, cond_bias, w, b, emb_w):
    """Pure-JAX reference mirroring the PyTorch Denoiser.forward semantics."""
    B, C, H, W = noised_input.shape
    s = sigma.reshape(B, 1, 1, 1)                       # append_dims(sigma, 4)
    c_skip = 1.0 / (s * s + 1.0)
    c_out = -s / jnp.sqrt(s * s + 1.0)
    c_in = 1.0 / jnp.sqrt(s * s + 1.0)
    c_noise = 0.25 * jnp.log(sigma)                     # reshaped to sigma_shape
    net = (jnp.einsum("oc,bchw->bohw", w, noised_input * c_in)
           + b.reshape(1, C, 1, 1)
           + emb_w.reshape(1, C, 1, 1) * c_noise.reshape(B, 1, 1, 1)
           + cond_bias.reshape(B, C, 1, 1))
    return net * c_out + noised_input * c_skip


if __name__ == "__main__":
    key = jax.random.PRNGKey(0)
    ks = jax.random.split(key, 12)

    # 1) Small shape consistent with the module (f32, small-C VPU path).
    B, C, H, W = 2, 4, 16, 16
    noised_input = jax.random.normal(ks[0], (B, C, H, W), dtype=jnp.float32)
    sigma = jnp.exp(jax.random.normal(ks[1], (B,), dtype=jnp.float32))   # sigma > 0
    cond_bias = jax.random.normal(ks[2], (B, C), dtype=jnp.float32)
    w = jax.random.normal(ks[3], (C, C), dtype=jnp.float32) * 0.1
    b = jax.random.normal(ks[4], (C,), dtype=jnp.float32) * 0.1
    emb_w = jax.random.normal(ks[5], (C,), dtype=jnp.float32) * 0.1

    out = jax.block_until_ready(
        denoiser_forward(noised_input, sigma, cond_bias, w, b, emb_w))
    ref = denoiser_reference(noised_input, sigma, cond_bias, w, b, emb_w)
    assert out.shape == (B, C, H, W)
    assert jnp.allclose(out, ref, rtol=1e-4, atol=1e-4), "f32 mismatch vs reference"

    # 2) Native-bf16 input, small-C path with (8,128) slab re-blocking, B = 1.
    B2, C2, H2, W2 = 1, 4, 64, 64
    x2 = jax.random.normal(ks[6], (B2, C2, H2, W2), jnp.float32).astype(jnp.bfloat16)
    sigma2 = jnp.exp(jax.random.normal(ks[7], (B2,), dtype=jnp.float32))
    cond2 = jax.random.normal(ks[8], (B2, C2), dtype=jnp.float32)
    out2 = jax.block_until_ready(denoiser_forward(x2, sigma2, cond2, w, b, emb_w))
    ref2 = denoiser_reference(x2.astype(jnp.float32), sigma2, cond2, w, b, emb_w)
    assert out2.dtype == jnp.bfloat16 and out2.shape == (B2, C2, H2, W2)
    assert jnp.allclose(out2.astype(jnp.float32), ref2, rtol=2e-2, atol=2e-2), \
        "bf16 small-C mismatch vs reference"

    # 3) Large-C MXU path (C > 8), bf16 activations + pre-cast bf16 weights.
    B3, C3, H3, W3 = 1, 16, 32, 32
    x3 = jax.random.normal(ks[9], (B3, C3, H3, W3), jnp.float32).astype(jnp.bfloat16)
    sigma3 = jnp.exp(jax.random.normal(ks[10], (B3,), dtype=jnp.float32))
    cond3 = jax.random.normal(ks[11], (B3, C3), dtype=jnp.float32)
    w3 = jax.random.normal(ks[3], (C3, C3), dtype=jnp.float32) * 0.1
    b3 = jax.random.normal(ks[4], (C3,), dtype=jnp.float32) * 0.1
    e3 = jax.random.normal(ks[5], (C3,), dtype=jnp.float32) * 0.1
    out3 = jax.block_until_ready(denoiser_forward(x3, sigma3, cond3, w3, b3, e3))
    ref3 = denoiser_reference(x3.astype(jnp.float32), sigma3, cond3, w3, b3, e3)
    assert out3.dtype == jnp.bfloat16 and out3.shape == (B3, C3, H3, W3)
    assert jnp.allclose(out3.astype(jnp.float32), ref3, rtol=2e-2, atol=2e-2), \
        "bf16 large-C mismatch vs reference"

    print("KERNEL_OK")
</pallas_src>

<mosaic_0001>
module attributes {stable_mosaic.version = 11 : i64} {
  func.func @_denoiser_small_c_kernel(%arg0: i32, %arg1: i32, %arg2: memref<2x16xf32, #tpu.memory_space<smem>>, %arg3: memref<2x4xf32, #tpu.memory_space<smem>>, %arg4: memref<2xf32, #tpu.memory_space<smem>>, %arg5: memref<1x4x1x256xf32, #tpu.memory_space<vmem>>, %arg6: memref<1x4x1x256xf32, #tpu.memory_space<vmem>>) attributes {dimension_semantics = [#tpu.dimension_semantics<parallel>, #tpu.dimension_semantics<parallel>], iteration_bounds = array<i64: 2, 1>, scalar_prefetch = 0 : i64, scratch_operands = 0 : i64, tpu.core_type = #tpu.core_type<tc>, window_params = [{transform_indices = @transform_0, window_bounds = array<i64: 2, 16>}, {transform_indices = @transform_1, window_bounds = array<i64: 2, 4>}, {transform_indices = @transform_2, window_bounds = array<i64: 2>}, {transform_indices = @transform_3, window_bounds = array<i64: 1, 4, 1, 256>}, {transform_indices = @transform_4, window_bounds = array<i64: 1, 4, 1, 256>}]} {
    %0 = arith.index_cast %arg0 : i32 to index
    %1 = memref.load %arg4[%0] : memref<2xf32, #tpu.memory_space<smem>>
    %c0 = arith.constant 0 : index
    %c0_0 = arith.constant 0 : index
    %c0_1 = arith.constant 0 : index
    %c0_2 = arith.constant 0 : index
    %2 = vector.load %arg5[%c0, %c0_0, %c0_1, %c0_2] : memref<1x4x1x256xf32, #tpu.memory_space<vmem>>, vector<1x1x1x256xf32>
    %3 = vector.shape_cast %2 : vector<1x1x1x256xf32> to vector<1x256xf32>
    %c0_3 = arith.constant 0 : index
    %c1 = arith.constant 1 : index
    %c0_4 = arith.constant 0 : index
    %c0_5 = arith.constant 0 : index
    %4 = vector.load %arg5[%c0_3, %c1, %c0_4, %c0_5] : memref<1x4x1x256xf32, #tpu.memory_space<vmem>>, vector<1x1x1x256xf32>
    %5 = vector.shape_cast %4 : vector<1x1x1x256xf32> to vector<1x256xf32>
    %c0_6 = arith.constant 0 : index
    %c2 = arith.constant 2 : index
    %c0_7 = arith.constant 0 : index
    %c0_8 = arith.constant 0 : index
    %6 = vector.load %arg5[%c0_6, %c2, %c0_7, %c0_8] : memref<1x4x1x256xf32, #tpu.memory_space<vmem>>, vector<1x1x1x256xf32>
    %7 = vector.shape_cast %6 : vector<1x1x1x256xf32> to vector<1x256xf32>
    %c0_9 = arith.constant 0 : index
    %c3 = arith.constant 3 : index
    %c0_10 = arith.constant 0 : index
    %c0_11 = arith.constant 0 : index
    %8 = vector.load %arg5[%c0_9, %c3, %c0_10, %c0_11] : memref<1x4x1x256xf32, #tpu.memory_space<vmem>>, vector<1x1x1x256xf32>
    %9 = vector.shape_cast %8 : vector<1x1x1x256xf32> to vector<1x256xf32>
    %10 = arith.index_cast %arg0 : i32 to index
    %c0_12 = arith.constant 0 : index
    %11 = memref.load %arg2[%10, %c0_12] : memref<2x16xf32, #tpu.memory_space<smem>>
    %12 = vector.broadcast %11 : f32 to vector<1x256xf32>
    %13 = arith.mulf %3, %12 : vector<1x256xf32>
    %14 = arith.index_cast %arg0 : i32 to index
    %c1_13 = arith.constant 1 : index
    %15 = memref.load %arg2[%14, %c1_13] : memref<2x16xf32, #tpu.memory_space<smem>>
    %16 = vector.broadcast %15 : f32 to vector<1x256xf32>
    %17 = arith.mulf %5, %16 : vector<1x256xf32>
    %18 = arith.addf %13, %17 : vector<1x256xf32>
    %19 = arith.index_cast %arg0 : i32 to index
    %c2_14 = arith.constant 2 : index
    %20 = memref.load %arg2[%19, %c2_14] : memref<2x16xf32, #tpu.memory_space<smem>>
    %21 = vector.broadcast %20 : f32 to vector<1x256xf32>
    %22 = arith.mulf %7, %21 : vector<1x256xf32>
    %23 = arith.addf %18, %22 : vector<1x256xf32>
    %24 = arith.index_cast %arg0 : i32 to index
    %c3_15 = arith.constant 3 : index
    %25 = memref.load %arg2[%24, %c3_15] : memref<2x16xf32, #tpu.memory_space<smem>>
    %26 = vector.broadcast %25 : f32 to vector<1x256xf32>
    %27 = arith.mulf %9, %26 : vector<1x256xf32>
    %28 = arith.addf %23, %27 : vector<1x256xf32>
    %29 = arith.index_cast %arg0 : i32 to index
    %c0_16 = arith.constant 0 : index
    %30 = memref.load %arg3[%29, %c0_16] : memref<2x4xf32, #tpu.memory_space<smem>>
    %31 = vector.broadcast %30 : f32 to vector<1x256xf32>
    %32 = arith.addf %28, %31 : vector<1x256xf32>
    %33 = vector.broadcast %1 : f32 to vector<1x256xf32>
    %34 = arith.mulf %3, %33 : vector<1x256xf32>
    %35 = arith.addf %32, %34 : vector<1x256xf32>
    %c0_17 = arith.constant 0 : index
    %c0_18 = arith.constant 0 : index
    %c0_19 = arith.constant 0 : index
    %c0_20 = arith.constant 0 : index
    %36 = vector.load %arg6[%c0_17, %c0_18, %c0_19, %c0_20] : memref<1x4x1x256xf32, #tpu.memory_space<vmem>>, vector<1x1x1x256xf32>
    %37 = vector.shape_cast %36 : vector<1x1x1x256xf32> to vector<1x256xf32>
    %38 = vector.shape_cast %35 : vector<1x256xf32> to vector<1x1x1x256xf32>
    tpu.vector_store %arg6[%c0_17, %c0_18, %c0_19, %c0_20], %38 {strides = array<i32>} : memref<1x4x1x256xf32, #tpu.memory_space<vmem>>, vector<1x1x1x256xf32>,
    %39 = arith.index_cast %arg0 : i32 to index
    %c4 = arith.constant 4 : index
    %40 = memref.load %arg2[%39, %c4] : memref<2x16xf32, #tpu.memory_space<smem>>
    %41 = vector.broadcast %40 : f32 to vector<1x256xf32>
    %42 = arith.mulf %3, %41 : vector<1x256xf32>
    %43 = arith.index_cast %arg0 : i32 to index
    %c5 = arith.constant 5 : index
    %44 = memref.load %arg2[%43, %c5] : memref<2x16xf32, #tpu.memory_space<smem>>
    %45 = vector.broadcast %44 : f32 to vector<1x256xf32>
    %46 = arith.mulf %5, %45 : vector<1x256xf32>
    %47 = arith.addf %42, %46 : vector<1x256xf32>
    %48 = arith.index_cast %arg0 : i32 to index
    %c6 = arith.constant 6 : index
    %49 = memref.load %arg2[%48, %c6] : memref<2x16xf32, #tpu.memory_space<smem>>
    %50 = vector.broadcast %49 : f32 to vector<1x256xf32>
    %51 = arith.mulf %7, %50 : vector<1x256xf32>
    %52 = arith.addf %47, %51 : vector<1x256xf32>
    %53 = arith.index_cast %arg0 : i32 to index
    %c7 = arith.constant 7 : index
    %54 = memref.load %arg2[%53, %c7] : memref<2x16xf32, #tpu.memory_space<smem>>
    %55 = vector.broadcast %54 : f32 to vector<1x256xf32>
    %56 = arith.mulf %9, %55 : vector<1x256xf32>
    %57 = arith.addf %52, %56 : vector<1x256xf32>
    %58 = arith.index_cast %arg0 : i32 to index
    %c1_21 = arith.constant 1 : index
    %59 = memref.load %arg3[%58, %c1_21] : memref<2x4xf32, #tpu.memory_space<smem>>
    %60 = vector.broadcast %59 : f32 to vector<1x256xf32>
    %61 = arith.addf %57, %60 : vector<1x256xf32>
    %62 = vector.broadcast %1 : f32 to vector<1x256xf32>
    %63 = arith.mulf %5, %62 : vector<1x256xf32>
    %64 = arith.addf %61, %63 : vector<1x256xf32>
    %c0_22 = arith.constant 0 : index
    %c1_23 = arith.constant 1 : index
    %c0_24 = arith.constant 0 : index
    %c0_25 = arith.constant 0 : index
    %65 = vector.load %arg6[%c0_22, %c1_23, %c0_24, %c0_25] : memref<1x4x1x256xf32, #tpu.memory_space<vmem>>, vector<1x1x1x256xf32>
    %66 = vector.shape_cast %65 : vector<1x1x1x256xf32> to vector<1x256xf32>
    %67 = vector.shape_cast %64 : vector<1x256xf32> to vector<1x1x1x256xf32>
    tpu.vector_store %arg6[%c0_22, %c1_23, %c0_24, %c0_25], %67 {strides = array<i32>} : memref<1x4x1x256xf32, #tpu.memory_space<vmem>>, vector<1x1x1x256xf32>,
    %68 = arith.index_cast %arg0 : i32 to index
    %c8 = arith.constant 8 : index
    %69 = memref.load %arg2[%68, %c8] : memref<2x16xf32, #tpu.memory_space<smem>>
    %70 = vector.broadcast %69 : f32 to vector<1x256xf32>
    %71 = arith.mulf %3, %70 : vector<1x256xf32>
    %72 = arith.index_cast %arg0 : i32 to index
    %c9 = arith.constant 9 : index
    %73 = memref.load %arg2[%72, %c9] : memref<2x16xf32, #tpu.memory_space<smem>>
    %74 = vector.broadcast %73 : f32 to vector<1x256xf32>
    %75 = arith.mulf %5, %74 : vector<1x256xf32>
    %76 = arith.addf %71, %75 : vector<1x256xf32>
    %77 = arith.index_cast %arg0 : i32 to index
    %c10 = arith.constant 10 : index
    %78 = memref.load %arg2[%77, %c10] : memref<2x16xf32, #tpu.memory_space<smem>>
    %79 = vector.broadcast %78 : f32 to vector<1x256xf32>
    %80 = arith.mulf %7, %79 : vector<1x256xf32>
    %81 = arith.addf %76, %80 : vector<1x256xf32>
    %82 = arith.index_cast %arg0 : i32 to index
    %c11 = arith.constant 11 : index
    %83 = memref.load %arg2[%82, %c11] : memref<2x16xf32, #tpu.memory_space<smem>>
    %84 = vector.broadcast %83 : f32 to vector<1x256xf32>
    %85 = arith.mulf %9, %84 : vector<1x256xf32>
    %86 = arith.addf %81, %85 : vector<1x256xf32>
    %87 = arith.index_cast %arg0 : i32 to index
    %c2_26 = arith.constant 2 : index
    %88 = memref.load %arg3[%87, %c2_26] : memref<2x4xf32, #tpu.memory_space<smem>>
    %89 = vector.broadcast %88 : f32 to vector<1x256xf32>
    %90 = arith.addf %86, %89 : vector<1x256xf32>
    %91 = vector.broadcast %1 : f32 to vector<1x256xf32>
    %92 = arith.mulf %7, %91 : vector<1x256xf32>
    %93 = arith.addf %90, %92 : vector<1x256xf32>
    %c0_27 = arith.constant 0 : index
    %c2_28 = arith.constant 2 : index
    %c0_29 = arith.constant 0 : index
    %c0_30 = arith.constant 0 : index
    %94 = vector.load %arg6[%c0_27, %c2_28, %c0_29, %c0_30] : memref<1x4x1x256xf32, #tpu.memory_space<vmem>>, vector<1x1x1x256xf32>
    %95 = vector.shape_cast %94 : vector<1x1x1x256xf32> to vector<1x256xf32>
    %96 = vector.shape_cast %93 : vector<1x256xf32> to vector<1x1x1x256xf32>
    tpu.vector_store %arg6[%c0_27, %c2_28, %c0_29, %c0_30], %96 {strides = array<i32>} : memref<1x4x1x256xf32, #tpu.memory_space<vmem>>, vector<1x1x1x256xf32>,
    %97 = arith.index_cast %arg0 : i32 to index
    %c12 = arith.constant 12 : index
    %98 = memref.load %arg2[%97, %c12] : memref<2x16xf32, #tpu.memory_space<smem>>
    %99 = vector.broadcast %98 : f32 to vector<1x256xf32>
    %100 = arith.mulf %3, %99 : vector<1x256xf32>
    %101 = arith.index_cast %arg0 : i32 to index
    %c13 = arith.constant 13 : index
    %102 = memref.load %arg2[%101, %c13] : memref<2x16xf32, #tpu.memory_space<smem>>
    %103 = vector.broadcast %102 : f32 to vector<1x256xf32>
    %104 = arith.mulf %5, %103 : vector<1x256xf32>
    %105 = arith.addf %100, %104 : vector<1x256xf32>
    %106 = arith.index_cast %arg0 : i32 to index
    %c14 = arith.constant 14 : index
    %107 = memref.load %arg2[%106, %c14] : memref<2x16xf32, #tpu.memory_space<smem>>
    %108 = vector.broadcast %107 : f32 to vector<1x256xf32>
    %109 = arith.mulf %7, %108 : vector<1x256xf32>
    %110 = arith.addf %105, %109 : vector<1x256xf32>
    %111 = arith.index_cast %arg0 : i32 to index
    %c15 = arith.constant 15 : index
    %112 = memref.load %arg2[%111, %c15] : memref<2x16xf32, #tpu.memory_space<smem>>
    %113 = vector.broadcast %112 : f32 to vector<1x256xf32>
    %114 = arith.mulf %9, %113 : vector<1x256xf32>
    %115 = arith.addf %110, %114 : vector<1x256xf32>
    %116 = arith.index_cast %arg0 : i32 to index
    %c3_31 = arith.constant 3 : index
    %117 = memref.load %arg3[%116, %c3_31] : memref<2x4xf32, #tpu.memory_space<smem>>
    %118 = vector.broadcast %117 : f32 to vector<1x256xf32>
    %119 = arith.addf %115, %118 : vector<1x256xf32>
    %120 = vector.broadcast %1 : f32 to vector<1x256xf32>
    %121 = arith.mulf %9, %120 : vector<1x256xf32>
    %122 = arith.addf %119, %121 : vector<1x256xf32>
    %c0_32 = arith.constant 0 : index
    %c3_33 = arith.constant 3 : index
    %c0_34 = arith.constant 0 : index
    %c0_35 = arith.constant 0 : index
    %123 = vector.load %arg6[%c0_32, %c3_33, %c0_34, %c0_35] : memref<1x4x1x256xf32, #tpu.memory_space<vmem>>, vector<1x1x1x256xf32>
    %124 = vector.shape_cast %123 : vector<1x1x1x256xf32> to vector<1x256xf32>
    %125 = vector.shape_cast %122 : vector<1x256xf32> to vector<1x1x1x256xf32>
    tpu.vector_store %arg6[%c0_32, %c3_33, %c0_34, %c0_35], %125 {strides = array<i32>} : memref<1x4x1x256xf32, #tpu.memory_space<vmem>>, vector<1x1x1x256xf32>,
    return
  }
  func.func @transform_0(%arg0: i32, %arg1: i32) -> (i32, i32) {
    %c0_i32 = arith.constant 0 : i32
    %c0_i32_0 = arith.constant 0 : i32
    %c0_i32_1 = arith.constant 0 : i32
    return %c0_i32, %c0_i32_0 : i32, i32
  }
  func.func @transform_1(%arg0: i32, %arg1: i32) -> (i32, i32) {
    %c0_i32 = arith.constant 0 : i32
    %c0_i32_0 = arith.constant 0 : i32
    %c0_i32_1 = arith.constant 0 : i32
    return %c0_i32, %c0_i32_0 : i32, i32
  }
  func.func @transform_2(%arg0: i32, %arg1: i32) -> i32 {
    %c0_i32 = arith.constant 0 : i32
    %c0_i32_0 = arith.constant 0 : i32
    return %c0_i32 : i32
  }
  func.func @transform_3(%arg0: i32, %arg1: i32) -> (i32, i32, i32, i32) {
    %c0_i32 = arith.constant 0 : i32
    %c0_i32_0 = arith.constant 0 : i32
    %c0_i32_1 = arith.constant 0 : i32
    return %arg0, %c0_i32, %arg1, %c0_i32_0 : i32, i32, i32, i32
  }
  func.func @transform_4(%arg0: i32, %arg1: i32) -> (i32, i32, i32, i32) {
    %c0_i32 = arith.constant 0 : i32
    %c0_i32_0 = arith.constant 0 : i32
    %c0_i32_1 = arith.constant 0 : i32
    return %arg0, %c0_i32, %arg1, %c0_i32_0 : i32, i32, i32, i32
  }
}

</mosaic_0001>

<llo_original>
// kernel: tpu_custom_call.1
$region0: #{tpu_custom_call.1}
  #allocation0 [shape = 'u32[]', space=smem, size = 0x4, offset = 0x4, fixed_abs, tag = 'smem constant byte address 0x4 - core index']
  #allocation1 [shape = 'u32[144,128]{1,0:T(1,128)}', space=vmem, size = 0x12000, scoped, tag = 'internal scratch']
  %s0 = inlined_call_operand.hbm [shape: f32[2,16], index: 0, kind: input, shape index: {}]
  %s1 = inlined_call_operand.vmem [shape: f32[2,4], index: 1, kind: input, shape index: {}]
  %s2 = inlined_call_operand.vmem [shape: f32[2], index: 2, kind: input, shape index: {}]
  %s3 = inlined_call_operand.hbm [shape: f32[2,4,1,256], index: 3, kind: input, shape index: {}]
  %s4 = inlined_call_operand.hbm [shape: f32[2,4,1,256], index: 4, kind: output, shape index: {}]
  %s5 = sld [smem:[#allocation0]]
  $region65: #{tpu_custom_call.1} parent=0
    _
  %s7 = ssub.s32 1, %s5
  %s8 = scalar_select 0, %s7, %s5
  $region1: #{tpu_custom_call.1} parent=0
    #allocation2 [shape = 'u8[1024]{0}', space=smem, size = 0x400, scoped, tag = 'input window, operand 0, single buffered']
    #allocation3 [shape = 's32[2]{0}', space=sflag, size = 0x8, scoped, tag = 'scoped memory for tpu_custom_call.1']
    #allocation4 [shape = 's32[2]{0}', space=sflag, size = 0x8, scoped, tag = 'scoped memory for tpu_custom_call.1']
    #allocation5 [shape = 's32[2]{0}', space=sflag, size = 0x8, scoped, tag = 'scoped memory for tpu_custom_call.1']
    #allocation6 [shape = 's32[2]{0}', space=sflag, size = 0x8, scoped, tag = 'scoped memory for tpu_custom_call.1']
    #allocation7 [shape = 'u8[1024]{0}', space=smem, size = 0x400, scoped, tag = 'input window, operand 1, single buffered']
    #allocation8 [shape = 'u8[512]{0}', space=smem, size = 0x200, scoped, tag = 'input window, operand 2, single buffered']
    #allocation9 [shape = 's32[1]{0}', space=sflag, size = 0x4, scoped, tag = 'scoped memory for tpu_custom_call.1']
    #allocation10 [shape = 'u8[8192]{0}', space=vmem, size = 0x2000, scoped, tag = 'input window, operand 3']
    #allocation11 [shape = 'u8[8192]{0}', space=vmem, size = 0x2000, scoped, tag = 'output window, operand 0']
    %9 = vsyncpa [#allocation5], 0
    %10 = vsyncpa [#allocation6], 0
    %11 = vsyncpa [#allocation9], 0
    %12 = vsyncpa [#allocation3], 0
    %s13 = scalar_lea.sflag [#allocation3], 1
    %14 = vsyncpa %s13, 0
    %15 = vsyncpa [#allocation4], 0
    %s16 = scalar_lea.sflag [#allocation4], 1
    %17 = vsyncpa %s16, 0
    loop: start=0, step=1, limit=4
    $region2: #{tpu_custom_call.1} parent=1 // loop_pre_header
      _
    $region3: #{tpu_custom_call.1} parent=1 // loop_header
      %s19 = sphi 0, %s23
      %p20 = scmp.ge.s32.totalorder %s19, 4
      %s26 = sphi 0, %s38
      %s27 = sphi 0, %s34
      %s28 = sphi 0, %s26
      %s29 = sphi 0, %s27
      %s30 = sphi 0, %s28
      %s31 = sphi 0, %s29
      %s39 = sphi 0, %s39
      %s41 = sphi 0, %s39
      %s42 = sphi 0, %s41
      %s56 = sphi 0, %s42
      %s60 = sphi 0, %s60
      %s62 = sphi 0, %s60
      %s63 = sphi 0, %s62
      %s77 = sphi 0, %s63
      %s81 = sphi 0, %s81
      %s83 = sphi 0, %s81
      %s84 = sphi 0, %s83
      %s98 = sphi 0, %s84
      %s106 = sphi 0, %s108
      %s109 = sphi 0, %s106
      %s110 = sphi 0, %s109
      %s126 = sphi 0, %s110
      %s134 = sphi 0, %s136
      %s137 = sphi 0, %s134
      %s138 = sphi 0, %s137
      %s154 = sphi 0, %s138
    $region4: #{tpu_custom_call.1} parent=1 // loop_header_branch
      %22 = sbr.rel (%p20) target = $region8
    $region5: #{tpu_custom_call.1} parent=1 // loop_body
      %s24 = ssub.s32 %s19, 1
      %s25 = ssub.s32 %s19, 2
      %s32 = sadd.s32 1, %s27
      %p33 = scmp.ge.s32.totalorder %s32, 1
      %s34 = scalar_select %p33, 0, %s32
      %s35 = sadd.s32 1, %s26
      %s36 = scalar_select %p33, %s35, %s26
      %p37 = scmp.ge.s32.totalorder %s36, 2
      %s38 = scalar_select %p37, 0, %s36
      %s40 = sadd.s32 %s39, 1
      %p43 = scmp.eq.s32.totalorder %s19, 1
      %p44 = scmp.ne.s32.totalorder %s39, %s41
      %p45 = scmp.eq.s32.totalorder %s19, 0
      %p46 = por %p44, %p45
      %p47 = scmp.ne.s32.totalorder %s39, %s41
      %p48 = scmp.eq.s32.totalorder %s24, 1
      %p49 = por %p47, %p48
      %p50 = scmp.ne.s32.totalorder %s41, %s42
      %p51 = scmp.eq.s32.totalorder %s24, 0
      %p52 = por %p50, %p51
      %p53 = scmp.ne.s32.totalorder %s41, %s42
      %p54 = scmp.eq.s32.totalorder %s25, 1
      %p55 = por %p53, %p54
      %p57 = scmp.ne.s32.totalorder %s42, %s56
      %p58 = scmp.eq.s32.totalorder %s25, 0
      %p59 = por %p57, %p58
      %s61 = sadd.s32 %s60, 1
      %p64 = scmp.eq.s32.totalorder %s19, 1
      %p65 = scmp.ne.s32.totalorder %s60, %s62
      %p66 = scmp.eq.s32.totalorder %s19, 0
      %p67 = por %p65, %p66
      %p68 = scmp.ne.s32.totalorder %s60, %s62
      %p69 = scmp.eq.s32.totalorder %s24, 1
      %p70 = por %p68, %p69
      %p71 = scmp.ne.s32.totalorder %s62, %s63
      %p72 = scmp.eq.s32.totalorder %s24, 0
      %p73 = por %p71, %p72
      %p74 = scmp.ne.s32.totalorder %s62, %s63
      %p75 = scmp.eq.s32.totalorder %s25, 1
      %p76 = por %p74, %p75
      %p78 = scmp.ne.s32.totalorder %s63, %s77
      %p79 = scmp.eq.s32.totalorder %s25, 0
      %p80 = por %p78, %p79
      %s82 = sadd.s32 %s81, 1
      %p85 = scmp.eq.s32.totalorder %s19, 1
      %p86 = scmp.ne.s32.totalorder %s81, %s83
      %p87 = scmp.eq.s32.totalorder %s19, 0
      %p88 = por %p86, %p87
      %p89 = scmp.ne.s32.totalorder %s81, %s83
      %p90 = scmp.eq.s32.totalorder %s24, 1
      %p91 = por %p89, %p90
      %p92 = scmp.ne.s32.totalorder %s83, %s84
      %p93 = scmp.eq.s32.totalorder %s24, 0
      %p94 = por %p92, %p93
      %p95 = scmp.ne.s32.totalorder %s83, %s84
      %p96 = scmp.eq.s32.totalorder %s25, 1
      %p97 = por %p95, %p96
      %p99 = scmp.ne.s32.totalorder %s84, %s98
      %p100 = scmp.eq.s32.totalorder %s25, 0
      %p101 = por %p99, %p100
      %s102 = ssub.s32 %s26, %s38
      %s103 = ssub.s32 %s27, %s34
      %s104 = sor.u32 %s102, %s103
      %p105 = scmp.eq.s32.totalorder %s104, 0
      %s107 = sadd.s32 %s106, 1
      %s108 = scalar_select %p105, %s106, %s107
      %p111 = pneg %p105
      %p112 = scmp.eq.s32.totalorder %s19, 1
      %p113 = por %p111, %p112
      %p114 = scmp.ne.s32.totalorder %s106, %s109
      %p115 = scmp.eq.s32.totalorder %s19, 0
      %p116 = por %p114, %p115
      %p117 = scmp.ne.s32.totalorder %s106, %s109
      %p118 = scmp.eq.s32.totalorder %s24, 1
      %p119 = por %p117, %p118
      %p120 = scmp.ne.s32.totalorder %s109, %s110
      %p121 = scmp.eq.s32.totalorder %s24, 0
      %p122 = por %p120, %p121
      %p123 = scmp.ne.s32.totalorder %s109, %s110
      %p124 = scmp.eq.s32.totalorder %s25, 1
      %p125 = por %p123, %p124
      %p127 = scmp.ne.s32.totalorder %s110, %s126
      %p128 = scmp.eq.s32.totalorder %s25, 0
      %p129 = por %p127, %p128
      %s130 = ssub.s32 %s26, %s38
      %s131 = ssub.s32 %s27, %s34
      %s132 = sor.u32 %s130, %s131
      %p133 = scmp.eq.s32.totalorder %s132, 0
      %s135 = sadd.s32 %s134, 1
      %s136 = scalar_select %p133, %s134, %s135
      %p139 = pneg %p133
      %p140 = scmp.eq.s32.totalorder %s19, 1
      %p141 = por %p139, %p140
      %p142 = scmp.ne.s32.totalorder %s134, %s137
      %p143 = scmp.eq.s32.totalorder %s19, 0
      %p144 = por %p142, %p143
      %p145 = scmp.ne.s32.totalorder %s134, %s137
      %p146 = scmp.eq.s32.totalorder %s24, 1
      %p147 = por %p145, %p146
      %p148 = scmp.ne.s32.totalorder %s137, %s138
      %p149 = scmp.eq.s32.totalorder %s24, 0
      %p150 = por %p148, %p149
      %p151 = scmp.ne.s32.totalorder %s137, %s138
      %p152 = scmp.eq.s32.totalorder %s25, 1
      %p153 = por %p151, %p152
      %p155 = scmp.ne.s32.totalorder %s138, %s154
      %p156 = scmp.eq.s32.totalorder %s25, 0
      %p157 = por %p155, %p156
      %p158 = scmp.le.s32.totalorder 1, %s19
      %p159 = scmp.lt.s32.totalorder %s19, 3
      %p160 = pnand %p158, %p159
      %p161 = pneg %p160
      // Predicated region
      $region9: #{tpu_custom_call.1} parent=5 // pred_check
        _
      $region10: #{tpu_custom_call.1} parent=5 // pred_check_branch
        %163 = sbr.rel (%p160) target = $region12
      $region11: #{tpu_custom_call.1} parent=5 // pred_region
        %s164 = ssub.s32 %s19, 1
        // Predicated region
        $region13: #{tpu_custom_call.1} parent=11 // pred_check
          %p165 = pneg %p52
        $region14: #{tpu_custom_call.1} parent=11 // pred_check_branch
          %167 = sbr.rel (%p165) target = $region16
        $region15: #{tpu_custom_call.1} parent=11 // pred_region
          %s169 = ssub.s32 32, 32
          %170 = vsyncadd [#allocation5], %s169
          %173 = dma.hbm_to_smem %s0, 32, [#allocation2], [#allocation5]
        $region16: #{tpu_custom_call.1} parent=11 // pred_fallthru
          _
        // Predicated region
        $region17: #{tpu_custom_call.1} parent=11 // pred_check
          %p174 = pneg %p73
        $region18: #{tpu_custom_call.1} parent=11 // pred_check_branch
          %176 = sbr.rel (%p174) target = $region20
        $region19: #{tpu_custom_call.1} parent=11 // pred_region
          %s178 = ssub.s32 32, 32
          %179 = vsyncadd [#allocation6], %s178
          %s181 = sshll.u32 %s1, 4
          %s182 = int_to_ptr.vmem [resolvable:$true] %s181
          %184 = dma.vmem_to_smem %s182, 32, [#allocation7], [#allocation6]
        $region20: #{tpu_custom_call.1} parent=11 // pred_fallthru
          _
        // Predicated region
        $region21: #{tpu_custom_call.1} parent=11 // pred_check
          %p185 = pneg %p94
        $region22: #{tpu_custom_call.1} parent=11 // pred_check_branch
          %187 = sbr.rel (%p185) target = $region24
        $region23: #{tpu_custom_call.1} parent=11 // pred_region
          %s189 = ssub.s32 16, 16
          %190 = vsyncadd [#allocation9], %s189
          %s192 = sshll.u32 %s2, 4
          %s193 = int_to_ptr.vmem [resolvable:$true] %s192
          %195 = dma.vmem_to_smem %s193, 16, [#allocation8], [#allocation9]
        $region24: #{tpu_custom_call.1} parent=11 // pred_fallthru
          _
      $region12: #{tpu_custom_call.1} parent=5 // pred_fallthru
        _
      %p196 = scmp.lt.s32.totalorder %s19, 2
      // Predicated region
      $region25: #{tpu_custom_call.1} parent=5 // pred_check
        %p197 = pneg %p196
      $region26: #{tpu_custom_call.1} parent=5 // pred_check_branch
        %199 = sbr.rel (%p197) target = $region28
      $region27: #{tpu_custom_call.1} parent=5 // pred_region
        // Predicated region
        $region29: #{tpu_custom_call.1} parent=27 // pred_check
          %p200 = pneg %p116
        $region30: #{tpu_custom_call.1} parent=27 // pred_check_branch
          %202 = sbr.rel (%p200) target = $region32
        $region31: #{tpu_custom_call.1} parent=27 // pred_region
          %s203 = sand.u32 %s106, 1
          %s204 = scalar_lea.sflag [#allocation3], %s203
          %s205 = sand.u32 %s106, 1
          %s206 = smul.addr %s205, 8
          %s207 = scalar_lea.vmem [#allocation10], %s206
          %s209 = ssub.s32 128, 128
          %210 = vsyncadd %s204, %s209
          %s211 = smul.addr %s27, 2
          %s212 = smul.addr %s26, 8
          %s213 = sadd.s32 %s211, %s212
          %s214 = smul.addr %s213, 16
          %s215 = scalar_lea.hbm %s3, %s214
          %s216 = sshll.u32 %s207, 4
          %s217 = int_to_ptr.vmem [resolvable:$true] %s216
          %222 = dma.hbm_to_vmem [thread:$0]  %s215, 128, %s217, %s204, 32, 32, 2
        $region32: #{tpu_custom_call.1} parent=27 // pred_fallthru
          _
      $region28: #{tpu_custom_call.1} parent=5 // pred_fallthru
        _
      %p223 = scmp.le.s32.totalorder 1, %s19
      %p224 = scmp.lt.s32.totalorder %s19, 3
      %p225 = pnand %p223, %p224
      %p226 = pneg %p225
      // Predicated region
      $region33: #{tpu_custom_call.1} parent=5 // pred_check
        _
      $region34: #{tpu_custom_call.1} parent=5 // pred_check_branch
        %228 = sbr.rel (%p225) target = $region36
      $region35: #{tpu_custom_call.1} parent=5 // pred_region
        %s229 = ssub.s32 %s19, 1
        // Predicated region
        $region37: #{tpu_custom_call.1} parent=35 // pred_check
          %p230 = pneg %p52
        $region38: #{tpu_custom_call.1} parent=35 // pred_check_branch
          %232 = sbr.rel (%p230) target = $region40
        $region39: #{tpu_custom_call.1} parent=35 // pred_region
          %233 = dma.done [#allocation5], 32
        $region40: #{tpu_custom_call.1} parent=35 // pred_fallthru
          _
        // Predicated region
        $region41: #{tpu_custom_call.1} parent=35 // pred_check
          %p234 = pneg %p73
        $region42: #{tpu_custom_call.1} parent=35 // pred_check_branch
          %236 = sbr.rel (%p234) target = $region44
        $region43: #{tpu_custom_call.1} parent=35 // pred_region
          %237 = dma.done [#allocation6], 32
        $region44: #{tpu_custom_call.1} parent=35 // pred_fallthru
          _
        // Predicated region
        $region45: #{tpu_custom_call.1} parent=35 // pred_check
          %p238 = pneg %p94
        $region46: #{tpu_custom_call.1} parent=35 // pred_check_branch
          %240 = sbr.rel (%p238) target = $region48
        $region47: #{tpu_custom_call.1} parent=35 // pred_region
          %241 = dma.done [#allocation9], 16
        $region48: #{tpu_custom_call.1} parent=35 // pred_fallthru
          _
        %s242 = sand.u32 %s109, 1
        %s243 = scalar_lea.sflag [#allocation3], %s242
        %s244 = sand.u32 %s109, 1
        %s245 = smul.addr %s244, 8
        %s246 = scalar_lea.vmem [#allocation10], %s245
        // Predicated region
        $region49: #{tpu_custom_call.1} parent=35 // pred_check
          %p247 = pneg %p122
        $region50: #{tpu_custom_call.1} parent=35 // pred_check_branch
          %249 = sbr.rel (%p247) target = $region52
        $region51: #{tpu_custom_call.1} parent=35 // pred_region
          %250 = dma.done %s243, 128
        $region52: #{tpu_custom_call.1} parent=35 // pred_fallthru
          _
        %251 = sfence
        %p252 = pneg %p52
        %p253 = pneg %p49
        %p254 = pneg %p73
        %p255 = pneg %p70
        %p256 = pneg %p94
        %p257 = pneg %p91
        %s258 = sand.u32 %s109, 1
        %s259 = scalar_lea.sflag [#allocation3], %s258
        %s260 = sand.u32 %s109, 1
        %s261 = smul.addr %s260, 8
        %s262 = scalar_lea.vmem [#allocation10], %s261
        %p263 = pneg %p122
        %p264 = pneg %p119
        %p265 = pneg %p150
        %p266 = pneg %p147
        %s267 = sand.u32 %s137, 1
        %s268 = scalar_lea.sflag [#allocation4], %s267
        %s269 = sand.u32 %s137, 1
        %s270 = smul.addr %s269, 8
        %s271 = scalar_lea.vmem [#allocation11], %s270
        %s272 = sld [smem:[#allocation8 + %s28]]
        %v273 = vld [vmem:[%s246] sm:$0x3]
        %s274 = scalar_lea.vmem %s246, 2 [#allocation10]
        %v275 = vld [vmem:[%s274] sm:$0x3]
        %s276 = scalar_lea.vmem %s246, 4 [#allocation10]
        %v277 = vld [vmem:[%s276] sm:$0x3]
        %s278 = scalar_lea.vmem %s246, 6 [#allocation10]
        %v279 = vld [vmem:[%s278] sm:$0x3]
        %s280 = smul.u32 %s28, 128
        %s281 = sld [smem:[#allocation2 + %s280]]
        %v282 = vstv %s281
        %v283 = vmul.f32 %v273, %v282
        %s284 = sadd.s32 %s280, 1
        %s285 = sld [smem:[#allocation2 + %s284]]
        %v286 = vstv %s285
        %v287 = vmul.f32 %v275, %v286
        %v288 = vadd.f32 %v283, %v287
        %s289 = sadd.s32 %s280, 2
        %s290 = sld [smem:[#allocation2 + %s289]]
        %v291 = vstv %s290
        %v292 = vmul.f32 %v277, %v291
        %v293 = vadd.f32 %v288, %v292
        %s294 = sadd.s32 %s280, 3
        %s295 = sld [smem:[#allocation2 + %s294]]
        %v296 = vstv %s295
        %v297 = vmul.f32 %v279, %v296
        %v298 = vadd.f32 %v293, %v297
        %s299 = sld [smem:[#allocation7 + %s280]]
        %v300 = vstv %s299
        %v301 = vadd.f32 %v298, %v300
        %v302 = vstv %s272
        %v303 = vmul.f32 %v273, %v302
        %v304 = vadd.f32 %v301, %v303
        %v305 = vlaneseq
        %vm306 = vcmp.ge.s32.totalorder %v305, 0
        %vm307 = vcmp.lt.s32.totalorder %v305, 256
        %vm308 = vmand %vm306, %vm307
        %309 = vst.msk [vmem:[%s271] sm:$0x3] %vm308, %v304
        %s310 = sadd.s32 %s280, 4
        %s311 = sld [smem:[#allocation2 + %s310]]
        %v312 = vstv %s311
        %v313 = vmul.f32 %v273, %v312
        %s314 = sadd.s32 %s280, 5
        %s315 = sld [smem:[#allocation2 + %s314]]
        %v316 = vstv %s315
        %v317 = vmul.f32 %v275, %v316
        %v318 = vadd.f32 %v313, %v317
        %s319 = sadd.s32 %s280, 6
        %s320 = sld [smem:[#allocation2 + %s319]]
        %v321 = vstv %s320
        %v322 = vmul.f32 %v277, %v321
        %v323 = vadd.f32 %v318, %v322
        %s324 = sadd.s32 %s280, 7
        %s325 = sld [smem:[#allocation2 + %s324]]
        %v326 = vstv %s325
        %v327 = vmul.f32 %v279, %v326
        %v328 = vadd.f32 %v323, %v327
        %s329 = sld [smem:[#allocation7 + %s284]]
        %v330 = vstv %s329
        %v331 = vadd.f32 %v328, %v330
        %v332 = vmul.f32 %v275, %v302
        %v333 = vadd.f32 %v331, %v332
        %s334 = scalar_lea.vmem %s271, 2 [#allocation11]
        %335 = vst.msk [vmem:[%s334] sm:$0x3] %vm308, %v333
        %s336 = sadd.s32 %s280, 8
        %s337 = sld [smem:[#allocation2 + %s336]]
        %v338 = vstv %s337
        %v339 = vmul.f32 %v273, %v338
        %s340 = sadd.s32 %s280, 9
        %s341 = sld [smem:[#allocation2 + %s340]]
        %v342 = vstv %s341
        %v343 = vmul.f32 %v275, %v342
        %v344 = vadd.f32 %v339, %v343
        %s345 = sadd.s32 %s280, 10
        %s346 = sld [smem:[#allocation2 + %s345]]
        %v347 = vstv %s346
        %v348 = vmul.f32 %v277, %v347
        %v349 = vadd.f32 %v344, %v348
        %s350 = sadd.s32 %s280, 11
        %s351 = sld [smem:[#allocation2 + %s350]]
        %v352 = vstv %s351
        %v353 = vmul.f32 %v279, %v352
        %v354 = vadd.f32 %v349, %v353
        %s355 = sld [smem:[#allocation7 + %s289]]
        %v356 = vstv %s355
        %v357 = vadd.f32 %v354, %v356
        %v358 = vmul.f32 %v277, %v302
        %v359 = vadd.f32 %v357, %v358
        %s360 = scalar_lea.vmem %s271, 4 [#allocation11]
        %361 = vst.msk [vmem:[%s360] sm:$0x3] %vm308, %v359
        %s362 = sadd.s32 %s280, 12
        %s363 = sld [smem:[#allocation2 + %s362]]
        %v364 = vstv %s363
        %v365 = vmul.f32 %v273, %v364
        %s366 = sadd.s32 %s280, 13
        %s367 = sld [smem:[#allocation2 + %s366]]
        %v368 = vstv %s367
        %v369 = vmul.f32 %v275, %v368
        %v370 = vadd.f32 %v365, %v369
        %s371 = sadd.s32 %s280, 14
        %s372 = sld [smem:[#allocation2 + %s371]]
        %v373 = vstv %s372
        %v374 = vmul.f32 %v277, %v373
        %v375 = vadd.f32 %v370, %v374
        %s376 = sadd.s32 %s280, 15
        %s377 = sld [smem:[#allocation2 + %s376]]
        %v378 = vstv %s377
        %v379 = vmul.f32 %v279, %v378
        %v380 = vadd.f32 %v375, %v379
        %s381 = sld [smem:[#allocation7 + %s294]]
        %v382 = vstv %s381
        %v383 = vadd.f32 %v380, %v382
        %v384 = vmul.f32 %v279, %v302
        %v385 = vadd.f32 %v383, %v384
        %s386 = scalar_lea.vmem %s271, 6 [#allocation11]
        %387 = vst.msk [vmem:[%s386] sm:$0x3] %vm308, %v385
        %s388 = sand.u32 %s137, 1
        %s389 = scalar_lea.sflag [#allocation4], %s388
        %s390 = sand.u32 %s137, 1
        %s391 = smul.addr %s390, 8
        %s392 = scalar_lea.vmem [#allocation11], %s391
        // Predicated region
        $region53: #{tpu_custom_call.1} parent=35 // pred_check
          %p393 = pneg %p147
        $region54: #{tpu_custom_call.1} parent=35 // pred_check_branch
          %395 = sbr.rel (%p393) target = $region56
        $region55: #{tpu_custom_call.1} parent=35 // pred_region
          %s397 = ssub.s32 128, 128
          %398 = vsyncadd %s389, %s397
          %s399 = smul.addr %s29, 2
          %s400 = smul.addr %s28, 8
          %s401 = sadd.s32 %s399, %s400
          %s402 = smul.addr %s401, 16
          %s403 = scalar_lea.hbm %s4, %s402
          %s404 = sshll.u32 %s392, 4
          %s405 = int_to_ptr.vmem [resolvable:$true] %s404
          %410 = dma.vmem_to_hbm [thread:$0]  %s405, 128, %s403, %s389, 32, 32, 2
        $region56: #{tpu_custom_call.1} parent=35 // pred_fallthru
          _
      $region36: #{tpu_custom_call.1} parent=5 // pred_fallthru
        _
      %p411 = scmp.le.s32.totalorder 2, %s19
      // Predicated region
      $region57: #{tpu_custom_call.1} parent=5 // pred_check
        %p412 = pneg %p411
      $region58: #{tpu_custom_call.1} parent=5 // pred_check_branch
        %414 = sbr.rel (%p412) target = $region60
      $region59: #{tpu_custom_call.1} parent=5 // pred_region
        %s415 = ssub.s32 %s19, 2
        // Predicated region
        $region61: #{tpu_custom_call.1} parent=59 // pred_check
          %p416 = pneg %p153
        $region62: #{tpu_custom_call.1} parent=59 // pred_check_branch
          %418 = sbr.rel (%p416) target = $region64
        $region63: #{tpu_custom_call.1} parent=59 // pred_region
          %s419 = sand.u32 %s138, 1
          %s420 = scalar_lea.sflag [#allocation4], %s419
          %s421 = sand.u32 %s138, 1
          %s422 = smul.addr %s421, 8
          %s423 = scalar_lea.vmem [#allocation11], %s422
          %424 = dma.done %s420, 128
        $region64: #{tpu_custom_call.1} parent=59 // pred_fallthru
          _
      $region60: #{tpu_custom_call.1} parent=5 // pred_fallthru
        _
    $region6: #{tpu_custom_call.1} parent=1 // loop_footer
      %s23 = sadd.s32 1, %s19
    $region7: #{tpu_custom_call.1} parent=1 // loop_footer_branch
      %18 = sbr.rel target = $region3
    $region8: #{tpu_custom_call.1} parent=1 // loop_exit
      _
    %425 = vsyncpa [#allocation3], 1
    %s426 = scalar_lea.sflag [#allocation3], 1
    %427 = vsyncpa %s426, 1
    %428 = vsyncpa [#allocation4], 1
    %s429 = scalar_lea.sflag [#allocation4], 1
    %430 = vsyncpa %s429, 1
    %431 = vsyncpa [#allocation5], 1
    %s432 = scalar_lea.sflag [#allocation5], 1
    %433 = vsyncpa %s432, 1
    %434 = vsyncpa [#allocation6], 1
    %s435 = scalar_lea.sflag [#allocation6], 1
    %436 = vsyncpa %s435, 1
    %437 = vsyncpa [#allocation9], 1

</llo_original>
